<compile_context>
chip_gen: v5e
topology: v5e:2x2
jax: 0.10.0
libtpu: 0.0.40
codegen_flags: <defaults>
</compile_context>

<pallas_src>
import functools

import jax
import jax.numpy as jnp
from jax.experimental import pallas as pl
from jax.experimental.pallas import tpu as pltpu


def _round_up(x, m):
    return ((x + m - 1) // m) * m


def _regression_head_kernel(x_ref, w1_ref, b1_ref, w2_ref, b2_ref, o_ref, *, chunks):
    """Fused dense -> tanh -> out_proj on one [TB, H] batch tile.

    `chunks` is a static tuple of (row_start, row_count) sub-tiles (multiples of 8
    rows).  The loop is a fully-unrolled static Python loop (equivalent to an
    unrolled fori_loop, but tolerates a ragged tail chunk): successive chunks are
    independent, so the scheduler can overlap the EUP tanh of one chunk with the
    MXU matmuls of the next, and the live f32 intermediate is only chunk x H.
    """
    w1 = w1_ref[...]                            # [H, H]  compute dtype (bf16)
    w2 = w2_ref[...]                            # [H, Lp] compute dtype (bf16)
    b1 = b1_ref[...].astype(jnp.float32)        # [1, H]  f32
    b2 = b2_ref[...].astype(jnp.float32)        # [1, Lp] f32
    for start, rows in chunks:                  # static, fully unrolled
        x = x_ref[pl.ds(start, rows), :].astype(w1.dtype)          # VPU cast -> bf16
        h = jnp.dot(x, w1, preferred_element_type=jnp.float32)     # MXU, f32 acc
        h = jnp.tanh(h + b1)                                       # VPU add + EUP tanh, f32
        y = jnp.dot(h.astype(w2.dtype), w2,
                    preferred_element_type=jnp.float32) + b2       # MXU, f32 acc
        o_ref[pl.ds(start, rows), :] = y.astype(o_ref.dtype)       # lane-dense store


def regression_head(features, w1t, b1, w2t, b2, *,
                    compute_dtype=jnp.bfloat16, tb_max=1024, row_chunk=256):
    """features: [B, H]; w1t: [H, H]; b1: [1, H]; w2t: [H, L]; b2: [1, L] -> [B, L]."""
    B, H = features.shape
    L = w2t.shape[1]
    out_dtype = features.dtype

    # Lane-dense padded output width (multiple of 128) -> unmasked vector stores.
    Lp = _round_up(max(L, 128), 128)

    # Batch tile: ~tb_max rows, multiple of 8 sublanes, sized so that any padding is
    # at most a few rows (avoids nearly doubling work / a big pad copy for ragged B).
    n_tiles = max(1, pl.cdiv(B, tb_max))
    tb = _round_up(pl.cdiv(B, n_tiles), 8)
    b_pad = _round_up(B, tb)

    x = features
    if b_pad != B:
        # Only for B not a multiple of 8 / tb; pad is <= a handful of rows of work.
        x = jnp.pad(x, ((0, b_pad - B), (0, 0)))

    # bf16 weights for the MXU (halves weight HBM traffic & VMEM); f32 biases.
    w1c = w1t.astype(compute_dtype)
    w2c = jnp.pad(w2t.astype(compute_dtype), ((0, 0), (0, Lp - L)))
    b1c = b1.astype(jnp.float32)
    b2c = jnp.pad(b2.astype(jnp.float32), ((0, 0), (0, Lp - L)))

    # Static row chunks inside a tile (MXU/EUP overlap); ragged last chunk allowed,
    # all chunk starts/sizes are multiples of 8 rows.
    chunk = min(row_chunk, tb)
    chunks = tuple((s, min(chunk, tb - s)) for s in range(0, tb, chunk))

    grid = (b_pad // tb,)

    # Megacore split only when >=2 tiles AND B amortizes the duplicated weight DMA.
    parallel = (grid[0] >= 2) and (b_pad >= 2 * H)
    semantics = ("parallel",) if parallel else ("arbitrary",)

    # Scheduling hint with per-operand dtype byte accounting.
    bytes_accessed = (
        x.size * x.dtype.itemsize
        + w1c.size * w1c.dtype.itemsize + b1c.size * b1c.dtype.itemsize
        + w2c.size * w2c.dtype.itemsize + b2c.size * b2c.dtype.itemsize
        + b_pad * Lp * jnp.dtype(out_dtype).itemsize)
    cost = pl.CostEstimate(
        flops=2 * b_pad * H * (H + Lp),
        transcendentals=b_pad * H,
        bytes_accessed=int(bytes_accessed))

    # Explicit VMEM budget: double-buffered x/out tiles + (double-buffered) resident
    # weights + f32 chunk intermediates, plus margin; capped at 64 MiB so the budget
    # is valid on every chip (v7x has 64 MiB per TensorCore).
    weight_bytes = (w1c.size * w1c.dtype.itemsize + w2c.size * w2c.dtype.itemsize
                    + b1c.size * b1c.dtype.itemsize + b2c.size * b2c.dtype.itemsize)
    tile_bytes = (2 * tb * H * x.dtype.itemsize
                  + 2 * tb * Lp * jnp.dtype(out_dtype).itemsize)
    tmp_bytes = 2 * chunk * (H + Lp) * 4        # f32 h / y chunk temporaries
    vmem_limit = int(min(max(2 * weight_bytes + tile_bytes + tmp_bytes + (4 << 20),
                             32 << 20),
                         64 << 20))

    kernel = functools.partial(_regression_head_kernel, chunks=chunks)

    out = pl.pallas_call(
        kernel,
        out_shape=jax.ShapeDtypeStruct((b_pad, Lp), out_dtype),
        grid=grid,
        in_specs=[
            pl.BlockSpec((tb, H), lambda i: (i, 0)),   # activations: tiled over batch
            pl.BlockSpec((H, H), lambda i: (0, 0)),    # W1: constant index map, VMEM-resident
            pl.BlockSpec((1, H), lambda i: (0, 0)),    # b1: resident
            pl.BlockSpec((H, Lp), lambda i: (0, 0)),   # W2 (lane-padded): resident
            pl.BlockSpec((1, Lp), lambda i: (0, 0)),   # b2 (lane-padded): resident
        ],
        out_specs=pl.BlockSpec((tb, Lp), lambda i: (i, 0)),
        compiler_params=pltpu.CompilerParams(
            dimension_semantics=semantics,
            vmem_limit_bytes=vmem_limit,
        ),
        cost_estimate=cost,
    )(x, w1c, b1c, w2c, b2c)

    return out[:B, :L]


def init_params(key, hidden_size, num_labels, dtype=jnp.float32):
    """Deterministic nn.Linear-style init (uniform +/- 1/sqrt(fan_in))."""
    k1, k2, k3, k4 = jax.random.split(key, 4)
    lim = 1.0 / (hidden_size ** 0.5)
    # stored as [in, out] == torch_weight.T
    w1t = jax.random.uniform(k1, (hidden_size, hidden_size), dtype, -lim, lim)
    b1 = jax.random.uniform(k2, (1, hidden_size), dtype, -lim, lim)
    w2t = jax.random.uniform(k3, (hidden_size, num_labels), dtype, -lim, lim)
    b2 = jax.random.uniform(k4, (1, num_labels), dtype, -lim, lim)
    return w1t, b1, w2t, b2


def reference_head(features, w1t, b1, w2t, b2, compute_dtype=jnp.bfloat16):
    """Pure-JAX reference with the same mixed-precision contract as the kernel."""
    xc = features.astype(compute_dtype)
    h = jnp.dot(xc, w1t.astype(compute_dtype), preferred_element_type=jnp.float32)
    h = jnp.tanh(h + b1.astype(jnp.float32))
    y = jnp.dot(h.astype(compute_dtype), w2t.astype(compute_dtype),
                preferred_element_type=jnp.float32) + b2.astype(jnp.float32)
    return y.astype(features.dtype)


if __name__ == "__main__":
    B, H, L = 8, 32, 3  # batch, hidden_size, num_labels (arousal/dominance/valence)
    key = jax.random.PRNGKey(0)
    kx, kp = jax.random.split(key)
    features = jax.random.normal(kx, (B, H), jnp.float32)
    w1t, b1, w2t, b2 = init_params(kp, H, L)

    out = jax.block_until_ready(regression_head(features, w1t, b1, w2t, b2))
    assert out.shape == (B, L)
    assert out.dtype == features.dtype

    # Strict check against the matching mixed-precision (bf16 MXU / f32 acc) reference.
    ref_mixed = reference_head(features, w1t, b1, w2t, b2, compute_dtype=jnp.bfloat16)
    assert jnp.allclose(out, ref_mixed, atol=1e-4, rtol=1e-3), "mismatch vs bf16 reference"

    # Loose semantic sanity check against the all-f32 math of the original module.
    ref_f32 = reference_head(features, w1t, b1, w2t, b2, compute_dtype=jnp.float32)
    assert jnp.allclose(out, ref_f32, atol=1e-1, rtol=1e-1), "mismatch vs f32 reference"

    print("KERNEL_OK")
</pallas_src>

<mosaic_0001>
module attributes {stable_mosaic.version = 11 : i64} {
  func.func @_regression_head_kernel(%arg0: i32, %arg1: memref<8x32xf32, #tpu.memory_space<vmem>>, %arg2: memref<32x32xbf16, #tpu.memory_space<vmem>>, %arg3: memref<1x32xf32, #tpu.memory_space<vmem>>, %arg4: memref<32x128xbf16, #tpu.memory_space<vmem>>, %arg5: memref<1x128xf32, #tpu.memory_space<vmem>>, %arg6: memref<8x128xf32, #tpu.memory_space<vmem>>) attributes {dimension_semantics = [#tpu.dimension_semantics<arbitrary>], iteration_bounds = array<i64: 1>, scalar_prefetch = 0 : i64, scratch_operands = 0 : i64, tpu.core_type = #tpu.core_type<tc>, window_params = [{transform_indices = @transform_0, window_bounds = array<i64: 8, 32>}, {pipeline_mode = #tpu.pipeline_mode<synchronous>, transform_indices = @transform_1, window_bounds = array<i64: 32, 32>}, {pipeline_mode = #tpu.pipeline_mode<synchronous>, transform_indices = @transform_2, window_bounds = array<i64: 1, 32>}, {pipeline_mode = #tpu.pipeline_mode<synchronous>, transform_indices = @transform_3, window_bounds = array<i64: 32, 128>}, {pipeline_mode = #tpu.pipeline_mode<synchronous>, transform_indices = @transform_4, window_bounds = array<i64: 1, 128>}, {transform_indices = @transform_5, window_bounds = array<i64: 8, 128>}]} {
    %c0 = arith.constant 0 : index
    %c0_0 = arith.constant 0 : index
    %0 = vector.load %arg2[%c0, %c0_0] : memref<32x32xbf16, #tpu.memory_space<vmem>>, vector<32x32xbf16>
    %c0_1 = arith.constant 0 : index
    %c0_2 = arith.constant 0 : index
    %1 = vector.load %arg4[%c0_1, %c0_2] : memref<32x128xbf16, #tpu.memory_space<vmem>>, vector<32x128xbf16>
    %c0_3 = arith.constant 0 : index
    %c0_4 = arith.constant 0 : index
    %2 = vector.load %arg3[%c0_3, %c0_4] : memref<1x32xf32, #tpu.memory_space<vmem>>, vector<1x32xf32>
    %c0_5 = arith.constant 0 : index
    %c0_6 = arith.constant 0 : index
    %3 = vector.load %arg5[%c0_5, %c0_6] : memref<1x128xf32, #tpu.memory_space<vmem>>, vector<1x128xf32>
    %c0_7 = arith.constant 0 : index
    %c0_8 = arith.constant 0 : index
    %4 = vector.load %arg1[%c0_7, %c0_8] : memref<8x32xf32, #tpu.memory_space<vmem>>, vector<8x32xf32>
    %5 = arith.truncf %4 : vector<8x32xf32> to vector<8x32xbf16>
    %cst = arith.constant dense<0.000000e+00> : vector<8x32xf32>
    %6 = tpu.matmul %5, %0, %cst {dimension_numbers = #tpu.dot_dimension_numbers<[1], [0], [0], [1], [0, 0, 1, 1], [], []>} : vector<8x32xbf16>, vector<32x32xbf16>, vector<8x32xf32> -> vector<8x32xf32>
    %7 = vector.broadcast %2 : vector<1x32xf32> to vector<8x32xf32>
    %8 = arith.addf %6, %7 : vector<8x32xf32>
    %9 = math.tanh %8 : vector<8x32xf32>
    %10 = arith.truncf %9 : vector<8x32xf32> to vector<8x32xbf16>
    %cst_9 = arith.constant dense<0.000000e+00> : vector<8x128xf32>
    %11 = tpu.matmul %10, %1, %cst_9 {dimension_numbers = #tpu.dot_dimension_numbers<[1], [0], [0], [1], [0, 0, 1, 1], [], []>} : vector<8x32xbf16>, vector<32x128xbf16>, vector<8x128xf32> -> vector<8x128xf32>
    %12 = vector.broadcast %3 : vector<1x128xf32> to vector<8x128xf32>
    %13 = arith.addf %11, %12 : vector<8x128xf32>
    %c0_10 = arith.constant 0 : index
    %c0_11 = arith.constant 0 : index
    %14 = vector.load %arg6[%c0_10, %c0_11] : memref<8x128xf32, #tpu.memory_space<vmem>>, vector<8x128xf32>
    tpu.vector_store %arg6[%c0_10, %c0_11], %13 {strides = array<i32>} : memref<8x128xf32, #tpu.memory_space<vmem>>, vector<8x128xf32>,
    return
  }
  func.func @transform_0(%arg0: i32) -> (i32, i32) {
    %c0_i32 = arith.constant 0 : i32
    %c0_i32_0 = arith.constant 0 : i32
    return %arg0, %c0_i32 : i32, i32
  }
  func.func @transform_1(%arg0: i32) -> (i32, i32) {
    %c0_i32 = arith.constant 0 : i32
    %c0_i32_0 = arith.constant 0 : i32
    %c0_i32_1 = arith.constant 0 : i32
    return %c0_i32, %c0_i32_0 : i32, i32
  }
  func.func @transform_2(%arg0: i32) -> (i32, i32) {
    %c0_i32 = arith.constant 0 : i32
    %c0_i32_0 = arith.constant 0 : i32
    %c0_i32_1 = arith.constant 0 : i32
    return %c0_i32, %c0_i32_0 : i32, i32
  }
  func.func @transform_3(%arg0: i32) -> (i32, i32) {
    %c0_i32 = arith.constant 0 : i32
    %c0_i32_0 = arith.constant 0 : i32
    %c0_i32_1 = arith.constant 0 : i32
    return %c0_i32, %c0_i32_0 : i32, i32
  }
  func.func @transform_4(%arg0: i32) -> (i32, i32) {
    %c0_i32 = arith.constant 0 : i32
    %c0_i32_0 = arith.constant 0 : i32
    %c0_i32_1 = arith.constant 0 : i32
    return %c0_i32, %c0_i32_0 : i32, i32
  }
  func.func @transform_5(%arg0: i32) -> (i32, i32) {
    %c0_i32 = arith.constant 0 : i32
    %c0_i32_0 = arith.constant 0 : i32
    return %arg0, %c0_i32 : i32, i32
  }
}

</mosaic_0001>

<llo_original>
// kernel: tpu_custom_call.1
$region0: #{tpu_custom_call.1}
  #allocation0 [shape = 'u32[]', space=smem, size = 0x4, offset = 0x4, fixed_abs, tag = 'smem constant byte address 0x4 - core index']
  #allocation1 [shape = 'u32[72,128]{1,0:T(1,128)}', space=vmem, size = 0x9000, scoped, tag = 'internal scratch']
  %s0 = inlined_call_operand.hbm [shape: f32[8,32], index: 0, kind: input, shape index: {}]
  %s1 = inlined_call_operand.hbm [shape: bf16[32,32], index: 1, kind: input, shape index: {}]
  %s2 = inlined_call_operand.vmem [shape: f32[1,32], index: 2, kind: input, shape index: {}]
  %s3 = inlined_call_operand.hbm [shape: bf16[32,128], index: 3, kind: input, shape index: {}]
  %s4 = inlined_call_operand.vmem [shape: f32[1,128], index: 4, kind: input, shape index: {}]
  %s5 = inlined_call_operand.hbm [shape: f32[8,128], index: 5, kind: output, shape index: {}]
  %s6 = sld [smem:[#allocation0]]
  $region42: #{tpu_custom_call.1} parent=0
    _
  %s8 = ssub.s32 1, %s6
  %s9 = scalar_select 0, %s8, %s6
  $region1: #{tpu_custom_call.1} parent=0
    #allocation2 [shape = 'u8[4096]{0}', space=vmem, size = 0x1000, scoped, tag = 'input window, operand 0, single buffered']
    #allocation3 [shape = 's32[1]{0}', space=sflag, size = 0x4, scoped, tag = 'scoped memory for tpu_custom_call.1']
    #allocation4 [shape = 's32[1]{0}', space=sflag, size = 0x4, scoped, tag = 'scoped memory for tpu_custom_call.1']
    #allocation5 [shape = 'u8[8192]{0}', space=vmem, size = 0x2000, scoped, tag = 'input window, operand 1, single buffered']
    #allocation6 [shape = 's32[1]{0}', space=sflag, size = 0x4, scoped, tag = 'scoped memory for tpu_custom_call.1']
    #allocation7 [shape = 'u8[8192]{0}', space=vmem, size = 0x2000, scoped, tag = 'input window, operand 3, single buffered']
    #allocation8 [shape = 'u8[4096]{0}', space=vmem, size = 0x1000, scoped, tag = 'output window, operand 0, single buffered']
    %10 = vsyncpa [#allocation3], 0
    %11 = vsyncpa [#allocation6], 0
    %12 = vsyncpa [#allocation4], 0
    // Predicated region
    $region2: #{tpu_custom_call.1} parent=1 // pred_check
      _
    $region3: #{tpu_custom_call.1} parent=1 // pred_check_branch
      %14 = sbr.rel (0) target = $region5
    $region4: #{tpu_custom_call.1} parent=1 // pred_region
      %16 = vsyncadd [#allocation3], 0
      %s18 = sshll.u32 %s0, 4
      %s19 = int_to_ptr.hbm [resolvable:$true] %s18
      %s20 = sshll.u32 [#allocation2], 4
      %s21 = int_to_ptr.vmem [resolvable:$true] %s20
      %23 = dma.hbm_to_vmem [thread:$0]  %s19, 128, %s21, [#allocation3]
    $region5: #{tpu_custom_call.1} parent=1 // pred_fallthru
      _
    // Predicated region
    $region6: #{tpu_custom_call.1} parent=1 // pred_check
      _
    $region7: #{tpu_custom_call.1} parent=1 // pred_check_branch
      %25 = sbr.rel (0) target = $region9
    $region8: #{tpu_custom_call.1} parent=1 // pred_region
      %27 = vsyncadd [#allocation6], 0
      %s28 = sshll.u32 %s1, 4
      %s29 = int_to_ptr.hbm [resolvable:$true] %s28
      %s30 = sshll.u32 [#allocation5], 4
      %s31 = int_to_ptr.vmem [resolvable:$true] %s30
      %36 = dma.hbm_to_vmem [thread:$0]  %s29, 256, %s31, [#allocation6], 64, 64, 4
    $region9: #{tpu_custom_call.1} parent=1 // pred_fallthru
      _
    // Predicated region
    $region10: #{tpu_custom_call.1} parent=1 // pred_check
      _
    $region11: #{tpu_custom_call.1} parent=1 // pred_check_branch
      %38 = sbr.rel (0) target = $region13
    $region12: #{tpu_custom_call.1} parent=1 // pred_region
      _
    $region13: #{tpu_custom_call.1} parent=1 // pred_fallthru
      _
    // Predicated region
    $region14: #{tpu_custom_call.1} parent=1 // pred_check
      _
    $region15: #{tpu_custom_call.1} parent=1 // pred_check_branch
      %40 = sbr.rel (0) target = $region17
    $region16: #{tpu_custom_call.1} parent=1 // pred_region
      %42 = vsyncadd [#allocation6], 0
      %s43 = sshll.u32 %s3, 4
      %s44 = int_to_ptr.hbm [resolvable:$true] %s43
      %s45 = sshll.u32 [#allocation7], 4
      %s46 = int_to_ptr.vmem [resolvable:$true] %s45
      %51 = dma.hbm_to_vmem [thread:$0]  %s44, 256, %s46, [#allocation6], 64, 64, 4
    $region17: #{tpu_custom_call.1} parent=1 // pred_fallthru
      _
    // Predicated region
    $region18: #{tpu_custom_call.1} parent=1 // pred_check
      _
    $region19: #{tpu_custom_call.1} parent=1 // pred_check_branch
      %53 = sbr.rel (0) target = $region21
    $region20: #{tpu_custom_call.1} parent=1 // pred_region
      _
    $region21: #{tpu_custom_call.1} parent=1 // pred_fallthru
      _
    // Predicated region
    $region22: #{tpu_custom_call.1} parent=1 // pred_check
      _
    $region23: #{tpu_custom_call.1} parent=1 // pred_check_branch
      %55 = sbr.rel (0) target = $region25
    $region24: #{tpu_custom_call.1} parent=1 // pred_region
      %57 = dma.done [#allocation3], 128
    $region25: #{tpu_custom_call.1} parent=1 // pred_fallthru
      _
    // Predicated region
    $region26: #{tpu_custom_call.1} parent=1 // pred_check
      _
    $region27: #{tpu_custom_call.1} parent=1 // pred_check_branch
      %59 = sbr.rel (0) target = $region29
    $region28: #{tpu_custom_call.1} parent=1 // pred_region
      %61 = dma.done [#allocation6], 256
    $region29: #{tpu_custom_call.1} parent=1 // pred_fallthru
      _
    // Predicated region
    $region30: #{tpu_custom_call.1} parent=1 // pred_check
      _
    $region31: #{tpu_custom_call.1} parent=1 // pred_check_branch
      %63 = sbr.rel (0) target = $region33
    $region32: #{tpu_custom_call.1} parent=1 // pred_region
      %65 = dma.done [#allocation6], 256
    $region33: #{tpu_custom_call.1} parent=1 // pred_fallthru
      _
    %v67 = vld [vmem:[#allocation5] sm:$0xf]
    %v68 = vld [vmem:[#allocation5 + $0x4] sm:$0xf]
    %v69 = vld [vmem:[#allocation5 + $0x8] sm:$0xf]
    %v70 = vld [vmem:[#allocation5 + $0xc] sm:$0xf]
    %v71 = vld [vmem:[#allocation7] sm:$0xf]
    %v72 = vld [vmem:[#allocation7 + $0x4] sm:$0xf]
    %v73 = vld [vmem:[#allocation7 + $0x8] sm:$0xf]
    %v74 = vld [vmem:[#allocation7 + $0xc] sm:$0xf]
    %v75 = vld [vmem:[%s2] sm:$0x1]
    %v76 = vld [vmem:[%s4] sm:$0x1]
    %v77 = vld [vmem:[#allocation2] sm:$0xff]
    %v78 = vpack.c.bf16 %v77, %v77
    %v80 = vperm.slane %v75, 0
    %v86 = vunpack.c.l.b16 %v67
    %v87 = vunpack.c.l.b16 %v68
    %v88 = vunpack.c.l.b16 %v69
    %v89 = vunpack.c.l.b16 %v70
    %v90 = vpack.c.b16 %v87, %v86
    %v91 = vpack.c.b16 %v89, %v88
    %vm94 = vcmask 261120
    %v96 = vsel %vm94, %v78, 0
    %98 = vmatpush.bf16.msra.mxu0 0
    %99 = vmatpush.bf16.msra.mxu0 0
    %100 = vmatpush.bf16.msra.mxu0 0
    %101 = vmatpush.bf16.msra.mxu0 0
    %102 = vmatpush.bf16.msra.mxu0 0
    %103 = vmatpush.bf16.msra.mxu0 0
    %104 = vmatpush.bf16.msra.mxu0 %v91
    %105 = vmatpush.bf16.msra.mxu0 %v90
    %106 = vmatmul.bf16.gmra.mxu0 %v96
    %v107 = vpop.f32.mrf.mxu0
    %v108 = vadd.f32 %v80, %v107
    %v109 = vpop.f32.mrf.mxu0
    %110 = vdwg.mxu0
    %v111 = vtanh.pop %v108
    %v112 = vpack.c.bf16 %v111, %v111
    %v114 = vperm.slane %v76, 0
    %v120 = vunpack.c.l.b16 %v71
    %v121 = vunpack.c.l.b16 %v72
    %v122 = vunpack.c.l.b16 %v73
    %v123 = vunpack.c.l.b16 %v74
    %v124 = vpack.c.b16 %v121, %v120
    %v125 = vpack.c.b16 %v123, %v122
    %v129 = vsel %vm94, %v112, 0
    %131 = vmatpush.bf16.msra.mxu0 0
    %132 = vmatpush.bf16.msra.mxu0 0
    %133 = vmatpush.bf16.msra.mxu0 0
    %134 = vmatpush.bf16.msra.mxu0 0
    %135 = vmatpush.bf16.msra.mxu0 0
    %136 = vmatpush.bf16.msra.mxu0 0
    %137 = vmatpush.bf16.msra.mxu0 %v125
    %138 = vmatpush.bf16.msra.mxu0 %v124
    %139 = vmatmul.bf16.gmra.mxu0 %v129
    %v140 = vpop.f32.mrf.mxu0
    %v141 = vadd.f32 %v114, %v140
    %v142 = vpop.f32.mrf.mxu0
    %143 = vdwg.mxu0
    %144 = vst [vmem:[#allocation8] sm:$0xff] %v141
    // Predicated region
    $region34: #{tpu_custom_call.1} parent=1 // pred_check
      _
    $region35: #{tpu_custom_call.1} parent=1 // pred_check_branch
      %146 = sbr.rel (0) target = $region37
    $region36: #{tpu_custom_call.1} parent=1 // pred_region
      %148 = vsyncadd [#allocation4], 0
      %s150 = sshll.u32 [#allocation8], 4
      %s151 = int_to_ptr.vmem [resolvable:$true] %s150
      %s152 = sshll.u32 %s5, 4
      %s153 = int_to_ptr.hbm [resolvable:$true] %s152
      %155 = dma.vmem_to_hbm [thread:$0]  %s151, 128, %s153, [#allocation4]
    $region37: #{tpu_custom_call.1} parent=1 // pred_fallthru
      _
    // Predicated region
    $region38: #{tpu_custom_call.1} parent=1 // pred_check
      _
    $region39: #{tpu_custom_call.1} parent=1 // pred_check_branch
      %157 = sbr.rel (0) target = $region41
    $region40: #{tpu_custom_call.1} parent=1 // pred_region
      %159 = dma.done [#allocation4], 128
    $region41: #{tpu_custom_call.1} parent=1 // pred_fallthru
      _
    %160 = vsyncpa [#allocation3], 1
    %161 = vsyncpa [#allocation6], 1
    %162 = vsyncpa [#allocation4], 1

</llo_original>
